<compile_context>
chip_gen: v6e
topology: v6e:2x2x1
jax: 0.10.0
libtpu: 0.0.40
codegen_flags: <defaults>
</compile_context>

<pallas_src>
import functools

import jax
import jax.numpy as jnp
from jax.experimental import pallas as pl
from jax.experimental.pallas import tpu as pltpu


def _round_up(x, m):
    return ((x + m - 1) // m) * m


def _fused_mlp_kernel(num_hidden_layers, *refs):
    """refs = (x_ref, w0, b0, w1, b1, ..., w_out, b_out, o_ref)."""
    x_ref = refs[0]
    o_ref = refs[-1]
    param_refs = refs[1:-1]

    h = x_ref[...]                                        # bf16 [TB, IN_PAD]
    # Hidden layers: Linear + ReLU (unrolled at trace time).
    for i in range(num_hidden_layers):
        w = param_refs[2 * i][...]                        # bf16 [in_i, out_i]
        b = param_refs[2 * i + 1][...]                    # f32  [1, out_i]
        y = jnp.dot(h, w, preferred_element_type=jnp.float32)   # MXU, f32 acc
        y = jnp.maximum(y + b, 0.0)                       # f32 bias + ReLU on VPU
        h = y.astype(jnp.bfloat16)                        # back to bf16 for next MXU op
    # Output layer: Linear (no activation).
    w_out = param_refs[2 * num_hidden_layers][...]        # bf16 [in_last, OUT_PAD]
    b_out = param_refs[2 * num_hidden_layers + 1][...]    # f32  [1, OUT_PAD]
    out = jnp.dot(h, w_out, preferred_element_type=jnp.float32) + b_out
    o_ref[...] = out.astype(o_ref.dtype)                  # lane-dense (128-multiple) store


def server_model_forward(h, params, *, batch_tile=256):
    """h: [batch, sum(hidden_size_list)] f32; params: list of (W [in,out], b [1,out]) f32."""
    num_hidden_layers = len(params) - 1
    batch, in_dim = h.shape
    out_size = params[-1][0].shape[1]

    # ---- lane-dense input: zero-pad the first layer's input features to 128 ----
    in_pad = _round_up(in_dim, 128)
    w0, b0 = params[0]
    if in_pad != in_dim:
        h = jnp.pad(h, ((0, 0), (0, in_pad - in_dim)))
        w0 = jnp.pad(w0, ((0, in_pad - in_dim), (0, 0)))     # extra rows are zero -> exact
    # ---- lane-dense output: zero-pad the last layer's output features to 128 ----
    out_pad = _round_up(out_size, 128)
    w_out, b_out = params[-1]
    if out_pad != out_size:
        w_out = jnp.pad(w_out, ((0, 0), (0, out_pad - out_size)))
        b_out = jnp.pad(b_out, ((0, 0), (0, out_pad - out_size)))
    padded_params = [(w0, b0)] + list(params[1:-1]) + [(w_out, b_out)]
    if num_hidden_layers == 0:                               # single-layer edge case
        padded_params = [(jnp.pad(w_out, ((0, in_pad - in_dim), (0, 0)))
                          if in_pad != in_dim else w_out, b_out)]

    # ---- bf16 weights for the MXU; biases stay f32 ----
    flat_params = []
    for w, b in padded_params:
        flat_params.append(w.astype(jnp.bfloat16))
        flat_params.append(b.astype(jnp.float32))

    # ---- batch padding / tiling (sublane multiple of 8) ----
    if batch <= batch_tile:
        tb = _round_up(batch, 8)
        padded_batch = tb
    else:
        tb = batch_tile
        padded_batch = _round_up(batch, tb)
    if padded_batch != batch:
        h = jnp.pad(h, ((0, padded_batch - batch), (0, 0)))
    h_bf16 = h.astype(jnp.bfloat16)
    num_batch_tiles = padded_batch // tb

    kernel = functools.partial(_fused_mlp_kernel, num_hidden_layers)

    # Input: tiled over batch. Params: resident across the whole grid (constant maps).
    in_specs = [pl.BlockSpec((tb, in_pad), lambda i: (i, 0))]
    for p in flat_params:
        in_specs.append(pl.BlockSpec(p.shape, lambda i: (0, 0)))   # all params are 2-D
    out_specs = pl.BlockSpec((tb, out_pad), lambda i: (i, 0))

    # ---- cost estimate (helps XLA schedule the custom call) ----
    dims = [in_pad] + [w.shape[1] for w, _ in padded_params]
    flops = sum(2 * padded_batch * k * n for k, n in zip(dims[:-1], dims[1:]))
    bytes_accessed = (h_bf16.size * 2
                      + sum(int(p.size) * p.dtype.itemsize for p in flat_params)
                      + padded_batch * out_pad * 4)
    cost = pl.CostEstimate(flops=int(flops), transcendentals=0,
                           bytes_accessed=int(bytes_accessed))

    # ---- explicit VMEM budget: resident params + double-buffered in/out tiles ----
    param_bytes = sum(int(p.size) * p.dtype.itemsize for p in flat_params)
    tile_bytes = 2 * (tb * in_pad * 2) + 2 * (tb * out_pad * 4)
    vmem_limit = int(min(max(2 * (param_bytes + tile_bytes), 4 << 20), 64 << 20))

    # TODO(synk): for very large in_dim (many clients), K-tile the first-layer
    # weight with a reduction grid axis + f32 accumulator instead of loading it
    # whole into VMEM (v7x has only 64 MiB per TensorCore).
    out = pl.pallas_call(
        kernel,
        out_shape=jax.ShapeDtypeStruct((padded_batch, out_pad), jnp.float32),
        grid=(num_batch_tiles,),
        in_specs=in_specs,
        out_specs=out_specs,
        compiler_params=pltpu.CompilerParams(
            dimension_semantics=("parallel",),
            vmem_limit_bytes=vmem_limit),
        cost_estimate=cost,
    )(h_bf16, *flat_params)

    return out[:batch, :out_size]


def init_server_model_params(key, hidden_size_list, out_size, hidden_layer_count=1):
    """Deterministic xavier-uniform weights, ones biases (matches module __init__ shapes)."""
    params = []
    hidden_size = sum(hidden_size_list)
    for _ in range(hidden_layer_count):
        out_h = hidden_size // 2
        key, sub = jax.random.split(key)
        bound = (6.0 / (hidden_size + out_h)) ** 0.5
        w = jax.random.uniform(sub, (hidden_size, out_h), jnp.float32, -bound, bound)
        b = jnp.ones((1, out_h), jnp.float32)
        params.append((w, b))
        hidden_size = out_h
    key, sub = jax.random.split(key)
    bound = (6.0 / (hidden_size + out_size)) ** 0.5
    w_out = jax.random.uniform(sub, (hidden_size, out_size), jnp.float32, -bound, bound)
    b_out = jnp.ones((1, out_size), jnp.float32)
    params.append((w_out, b_out))
    return params


def _reference_forward(h, params):
    """Mirrors kernel numerics: bf16 MXU operands, f32 accumulation / bias / ReLU."""
    x = h.astype(jnp.bfloat16)
    for i, (w, b) in enumerate(params):
        y = jnp.dot(x, w.astype(jnp.bfloat16), preferred_element_type=jnp.float32) + b
        if i < len(params) - 1:
            y = jnp.maximum(y, 0.0)
            x = y.astype(jnp.bfloat16)
        else:
            x = y
    return x


if __name__ == "__main__":
    key = jax.random.PRNGKey(0)

    # ServerModel(hidden_size_list=[16, 16], out_size=8, hidden_layer_count=1)
    hidden_size_list = [16, 16]
    out_size = 8
    hidden_layer_count = 1
    batch = 2

    key, pkey, xkey = jax.random.split(key, 3)
    params = init_server_model_params(pkey, hidden_size_list, out_size,
                                      hidden_layer_count)
    # Input h is the concatenation of client embeddings: [batch, sum(hidden_size_list)]
    h = jax.random.normal(xkey, (batch, sum(hidden_size_list)), jnp.float32)

    out = server_model_forward(h, params)
    out = jax.block_until_ready(out)

    ref = _reference_forward(h, params)
    assert out.shape == (batch, out_size)
    assert jnp.allclose(out, ref, atol=5e-3, rtol=5e-3), float(jnp.max(jnp.abs(out - ref)))

    print("KERNEL_OK")
</pallas_src>

<mosaic_0001>
module attributes {stable_mosaic.version = 11 : i64} {
  func.func @_fused_mlp_kernel(%arg0: i32, %arg1: memref<8x128xbf16, #tpu.memory_space<vmem>>, %arg2: memref<128x16xbf16, #tpu.memory_space<vmem>>, %arg3: memref<1x16xf32, #tpu.memory_space<vmem>>, %arg4: memref<16x128xbf16, #tpu.memory_space<vmem>>, %arg5: memref<1x128xf32, #tpu.memory_space<vmem>>, %arg6: memref<8x128xf32, #tpu.memory_space<vmem>>) attributes {dimension_semantics = [#tpu.dimension_semantics<parallel>], iteration_bounds = array<i64: 1>, scalar_prefetch = 0 : i64, scratch_operands = 0 : i64, tpu.core_type = #tpu.core_type<tc>, window_params = [{transform_indices = @transform_0, window_bounds = array<i64: 8, 128>}, {pipeline_mode = #tpu.pipeline_mode<synchronous>, transform_indices = @transform_1, window_bounds = array<i64: 128, 16>}, {pipeline_mode = #tpu.pipeline_mode<synchronous>, transform_indices = @transform_2, window_bounds = array<i64: 1, 16>}, {pipeline_mode = #tpu.pipeline_mode<synchronous>, transform_indices = @transform_3, window_bounds = array<i64: 16, 128>}, {pipeline_mode = #tpu.pipeline_mode<synchronous>, transform_indices = @transform_4, window_bounds = array<i64: 1, 128>}, {transform_indices = @transform_5, window_bounds = array<i64: 8, 128>}]} {
    %c0 = arith.constant 0 : index
    %c0_0 = arith.constant 0 : index
    %0 = vector.load %arg1[%c0, %c0_0] : memref<8x128xbf16, #tpu.memory_space<vmem>>, vector<8x128xbf16>
    %c0_1 = arith.constant 0 : index
    %c0_2 = arith.constant 0 : index
    %1 = vector.load %arg2[%c0_1, %c0_2] : memref<128x16xbf16, #tpu.memory_space<vmem>>, vector<128x16xbf16>
    %c0_3 = arith.constant 0 : index
    %c0_4 = arith.constant 0 : index
    %2 = vector.load %arg3[%c0_3, %c0_4] : memref<1x16xf32, #tpu.memory_space<vmem>>, vector<1x16xf32>
    %cst = arith.constant dense<0.000000e+00> : vector<8x16xf32>
    %3 = tpu.matmul %0, %1, %cst {dimension_numbers = #tpu.dot_dimension_numbers<[1], [0], [0], [1], [0, 0, 1, 1], [], []>} : vector<8x128xbf16>, vector<128x16xbf16>, vector<8x16xf32> -> vector<8x16xf32>
    %4 = vector.broadcast %2 : vector<1x16xf32> to vector<8x16xf32>
    %5 = arith.addf %3, %4 : vector<8x16xf32>
    %cst_5 = arith.constant 0.000000e+00 : f32
    %6 = vector.broadcast %cst_5 : f32 to vector<8x16xf32>
    %7 = arith.maximumf %5, %6 : vector<8x16xf32>
    %8 = arith.truncf %7 : vector<8x16xf32> to vector<8x16xbf16>
    %c0_6 = arith.constant 0 : index
    %c0_7 = arith.constant 0 : index
    %9 = vector.load %arg4[%c0_6, %c0_7] : memref<16x128xbf16, #tpu.memory_space<vmem>>, vector<16x128xbf16>
    %c0_8 = arith.constant 0 : index
    %c0_9 = arith.constant 0 : index
    %10 = vector.load %arg5[%c0_8, %c0_9] : memref<1x128xf32, #tpu.memory_space<vmem>>, vector<1x128xf32>
    %cst_10 = arith.constant dense<0.000000e+00> : vector<8x128xf32>
    %11 = tpu.matmul %8, %9, %cst_10 {dimension_numbers = #tpu.dot_dimension_numbers<[1], [0], [0], [1], [0, 0, 1, 1], [], []>} : vector<8x16xbf16>, vector<16x128xbf16>, vector<8x128xf32> -> vector<8x128xf32>
    %12 = vector.broadcast %10 : vector<1x128xf32> to vector<8x128xf32>
    %13 = arith.addf %11, %12 : vector<8x128xf32>
    %c0_11 = arith.constant 0 : index
    %c0_12 = arith.constant 0 : index
    %14 = vector.load %arg6[%c0_11, %c0_12] : memref<8x128xf32, #tpu.memory_space<vmem>>, vector<8x128xf32>
    tpu.vector_store %arg6[%c0_11, %c0_12], %13 {strides = array<i32>} : memref<8x128xf32, #tpu.memory_space<vmem>>, vector<8x128xf32>,
    return
  }
  func.func @transform_0(%arg0: i32) -> (i32, i32) {
    %c0_i32 = arith.constant 0 : i32
    %c0_i32_0 = arith.constant 0 : i32
    return %arg0, %c0_i32 : i32, i32
  }
  func.func @transform_1(%arg0: i32) -> (i32, i32) {
    %c0_i32 = arith.constant 0 : i32
    %c0_i32_0 = arith.constant 0 : i32
    %c0_i32_1 = arith.constant 0 : i32
    return %c0_i32, %c0_i32_0 : i32, i32
  }
  func.func @transform_2(%arg0: i32) -> (i32, i32) {
    %c0_i32 = arith.constant 0 : i32
    %c0_i32_0 = arith.constant 0 : i32
    %c0_i32_1 = arith.constant 0 : i32
    return %c0_i32, %c0_i32_0 : i32, i32
  }
  func.func @transform_3(%arg0: i32) -> (i32, i32) {
    %c0_i32 = arith.constant 0 : i32
    %c0_i32_0 = arith.constant 0 : i32
    %c0_i32_1 = arith.constant 0 : i32
    return %c0_i32, %c0_i32_0 : i32, i32
  }
  func.func @transform_4(%arg0: i32) -> (i32, i32) {
    %c0_i32 = arith.constant 0 : i32
    %c0_i32_0 = arith.constant 0 : i32
    %c0_i32_1 = arith.constant 0 : i32
    return %c0_i32, %c0_i32_0 : i32, i32
  }
  func.func @transform_5(%arg0: i32) -> (i32, i32) {
    %c0_i32 = arith.constant 0 : i32
    %c0_i32_0 = arith.constant 0 : i32
    return %arg0, %c0_i32 : i32, i32
  }
}

</mosaic_0001>

<llo_original>
// kernel: tpu_custom_call.1
$region0: #{tpu_custom_call.1}
  #allocation0 [shape = 'u32[]', space=smem, size = 0x4, offset = 0x4, fixed_abs, tag = 'smem constant byte address 0x4 - core index']
  #allocation1 [shape = 'u32[144,128]{1,0:T(1,128)}', space=vmem, size = 0x12000, scoped, tag = 'internal scratch']
  %s0 = inlined_call_operand.vmem [shape: bf16[8,128], index: 0, kind: input, shape index: {}]
  %s1 = inlined_call_operand.vmem [shape: bf16[128,16], index: 1, kind: input, shape index: {}]
  %s2 = inlined_call_operand.vmem [shape: f32[1,16], index: 2, kind: input, shape index: {}]
  %s3 = inlined_call_operand.vmem [shape: bf16[16,128], index: 3, kind: input, shape index: {}]
  %s4 = inlined_call_operand.vmem [shape: f32[1,128], index: 4, kind: input, shape index: {}]
  %s5 = inlined_call_operand.hbm [shape: f32[8,128], index: 5, kind: output, shape index: {}]
  %s6 = sld [smem:[#allocation0]]
  $region30: #{tpu_custom_call.1} parent=0
    _
  %s8 = ssub.s32 1, %s6
  %s9 = scalar_select 0, %s8, %s6
  $region1: #{tpu_custom_call.1} parent=0
    #allocation2 [shape = 'u8[4096]{0}', space=vmem, size = 0x1000, scoped, tag = 'output window, operand 0, single buffered']
    #allocation3 [shape = 's32[1]{0}', space=sflag, size = 0x4, scoped, tag = 'scoped memory for tpu_custom_call.1']
    %10 = vsyncpa [#allocation3], 0
    // Predicated region
    $region2: #{tpu_custom_call.1} parent=1 // pred_check
      _
    $region3: #{tpu_custom_call.1} parent=1 // pred_check_branch
      %12 = sbr.rel (0) target = $region5
    $region4: #{tpu_custom_call.1} parent=1 // pred_region
      _
    $region5: #{tpu_custom_call.1} parent=1 // pred_fallthru
      _
    // Predicated region
    $region6: #{tpu_custom_call.1} parent=1 // pred_check
      _
    $region7: #{tpu_custom_call.1} parent=1 // pred_check_branch
      %14 = sbr.rel (0) target = $region9
    $region8: #{tpu_custom_call.1} parent=1 // pred_region
      _
    $region9: #{tpu_custom_call.1} parent=1 // pred_fallthru
      _
    // Predicated region
    $region10: #{tpu_custom_call.1} parent=1 // pred_check
      _
    $region11: #{tpu_custom_call.1} parent=1 // pred_check_branch
      %16 = sbr.rel (0) target = $region13
    $region12: #{tpu_custom_call.1} parent=1 // pred_region
      _
    $region13: #{tpu_custom_call.1} parent=1 // pred_fallthru
      _
    // Predicated region
    $region14: #{tpu_custom_call.1} parent=1 // pred_check
      _
    $region15: #{tpu_custom_call.1} parent=1 // pred_check_branch
      %18 = sbr.rel (0) target = $region17
    $region16: #{tpu_custom_call.1} parent=1 // pred_region
      _
    $region17: #{tpu_custom_call.1} parent=1 // pred_fallthru
      _
    // Predicated region
    $region18: #{tpu_custom_call.1} parent=1 // pred_check
      _
    $region19: #{tpu_custom_call.1} parent=1 // pred_check_branch
      %20 = sbr.rel (0) target = $region21
    $region20: #{tpu_custom_call.1} parent=1 // pred_region
      _
    $region21: #{tpu_custom_call.1} parent=1 // pred_fallthru
      _
    %v22 = vld [vmem:[%s0] sm:$0xf]
    %v23 = vld [vmem:[%s1] sm:$0xf]
    %v24 = vld [vmem:[%s1 + $0x4] sm:$0xf]
    %v25 = vld [vmem:[%s1 + $0x8] sm:$0xf]
    %v26 = vld [vmem:[%s1 + $0xc] sm:$0xf]
    %v27 = vld [vmem:[%s1 + $0x10] sm:$0xf]
    %v28 = vld [vmem:[%s1 + $0x14] sm:$0xf]
    %v29 = vld [vmem:[%s1 + $0x18] sm:$0xf]
    %v30 = vld [vmem:[%s1 + $0x1c] sm:$0xf]
    %v31 = vld [vmem:[%s1 + $0x20] sm:$0xf]
    %v32 = vld [vmem:[%s1 + $0x24] sm:$0xf]
    %v33 = vld [vmem:[%s1 + $0x28] sm:$0xf]
    %v34 = vld [vmem:[%s1 + $0x2c] sm:$0xf]
    %v35 = vld [vmem:[%s1 + $0x30] sm:$0xf]
    %v36 = vld [vmem:[%s1 + $0x34] sm:$0xf]
    %v37 = vld [vmem:[%s1 + $0x38] sm:$0xf]
    %v38 = vld [vmem:[%s1 + $0x3c] sm:$0xf]
    %v39 = vld [vmem:[%s2] sm:$0x1]
    %v41 = vlaneseq
    %v42 = vshrl.u32 %v41, 7
    %v43 = vsub.s32 0, %v42
    %v44 = vrot.slane %v39, %v43
    %v62 = vunpack.c.l.b16 %v23
    %v63 = vunpack.c.l.b16 %v24
    %v64 = vunpack.c.l.b16 %v25
    %v65 = vunpack.c.l.b16 %v26
    %v66 = vunpack.c.l.b16 %v27
    %v67 = vunpack.c.l.b16 %v28
    %v68 = vunpack.c.l.b16 %v29
    %v69 = vunpack.c.l.b16 %v30
    %v70 = vunpack.c.l.b16 %v31
    %v71 = vunpack.c.l.b16 %v32
    %v72 = vunpack.c.l.b16 %v33
    %v73 = vunpack.c.l.b16 %v34
    %v74 = vunpack.c.l.b16 %v35
    %v75 = vunpack.c.l.b16 %v36
    %v76 = vunpack.c.l.b16 %v37
    %v77 = vunpack.c.l.b16 %v38
    %v78 = vpack.c.b16 %v63, %v62
    %v79 = vpack.c.b16 %v65, %v64
    %v80 = vpack.c.b16 %v67, %v66
    %v81 = vpack.c.b16 %v69, %v68
    %v82 = vpack.c.b16 %v71, %v70
    %v83 = vpack.c.b16 %v73, %v72
    %v84 = vpack.c.b16 %v75, %v74
    %v85 = vpack.c.b16 %v77, %v76
    %94 = vmatprep.subr.bf16.mxu0 0
    %95 = vmatpush1.bf16.msra.mxu0 %v85
    %96 = vmatprep.subr.bf16.mxu0 0
    %97 = vmatpush1.bf16.msra.mxu0 %v84
    %98 = vmatprep.subr.bf16.mxu0 0
    %99 = vmatpush1.bf16.msra.mxu0 %v83
    %100 = vmatprep.subr.bf16.mxu0 0
    %101 = vmatpush1.bf16.msra.mxu0 %v82
    %102 = vmatprep.subr.bf16.mxu0 0
    %103 = vmatpush1.bf16.msra.mxu0 %v81
    %104 = vmatprep.subr.bf16.mxu0 0
    %105 = vmatpush1.bf16.msra.mxu0 %v80
    %106 = vmatprep.subr.bf16.mxu0 0
    %107 = vmatpush1.bf16.msra.mxu0 %v79
    %108 = vmatprep.subr.bf16.mxu0 0
    %109 = vmatpush1.bf16.msra.mxu0 %v78
    %110 = vmatprep.subr.bf16.mxu0 0
    %111 = vmatpush2.bf16.msra.mxu0 0
    %112 = vmatprep.subr.bf16.mxu0 0
    %113 = vmatpush2.bf16.msra.mxu0 0
    %114 = vmatprep.subr.bf16.mxu0 0
    %115 = vmatpush2.bf16.msra.mxu0 0
    %116 = vmatprep.subr.bf16.mxu0 0
    %117 = vmatpush2.bf16.msra.mxu0 0
    %118 = vmatprep.subr.bf16.mxu0 0
    %119 = vmatpush2.bf16.msra.mxu0 0
    %120 = vmatprep.subr.bf16.mxu0 0
    %121 = vmatpush2.bf16.msra.mxu0 0
    %122 = vmatprep.subr.bf16.mxu0 0
    %123 = vmatpush2.bf16.msra.mxu0 0
    %124 = vmatprep.subr.bf16.mxu0 0
    %125 = vmatpush2.bf16.msra.mxu0 0
    %126 = vmatprep.mubr.bf16.mxu0 0
    %127 = vmatmul.mubr.bf16.gmra.mxu0 %v22
    %v128 = vpop.f32.mrf.mxu0
    %v129 = vadd.f32 %v44, %v128
    %v130 = vpop.f32.mrf.mxu0
    %v131 = vpop.f32.mrf.mxu0
    %v132 = vpop.f32.mrf.mxu0
    %133 = vdwg.mxu0
    %v134 = vmax.f32 %v129, 0.0
    %v135 = vpack.c.bf16 %v134, %v134
    %v136 = vld [vmem:[%s3] sm:$0xf]
    %v137 = vld [vmem:[%s3 + $0x4] sm:$0xf]
    %v138 = vld [vmem:[%s4] sm:$0x1]
    %v140 = vlaneseq
    %v141 = vshrl.u32 %v140, 7
    %v142 = vsub.s32 0, %v141
    %v143 = vrot.slane %v138, %v142
    %v147 = vunpack.c.l.b16 %v136
    %v148 = vunpack.c.l.b16 %v137
    %v149 = vpack.c.b16 %v148, %v147
    %vm151 = vcmask 130048
    %v153 = vsel %vm151, %v135, 0
    %155 = vmatprep.subr.bf16.mxu0 0
    %156 = vmatpush1.bf16.msra.mxu0 0
    %157 = vmatprep.subr.bf16.mxu0 0
    %158 = vmatpush1.bf16.msra.mxu0 0
    %159 = vmatprep.subr.bf16.mxu0 0
    %160 = vmatpush1.bf16.msra.mxu0 0
    %161 = vmatprep.subr.bf16.mxu0 0
    %162 = vmatpush1.bf16.msra.mxu0 0
    %163 = vmatprep.subr.bf16.mxu0 0
    %164 = vmatpush1.bf16.msra.mxu0 0
    %165 = vmatprep.subr.bf16.mxu0 0
    %166 = vmatpush1.bf16.msra.mxu0 0
    %167 = vmatprep.subr.bf16.mxu0 0
    %168 = vmatpush1.bf16.msra.mxu0 0
    %169 = vmatprep.subr.bf16.mxu0 0
    %170 = vmatpush1.bf16.msra.mxu0 %v149
    %171 = vmatprep.subr.bf16.mxu0 0
    %172 = vmatpush2.bf16.msra.mxu0 0
    %173 = vmatprep.subr.bf16.mxu0 0
    %174 = vmatpush2.bf16.msra.mxu0 0
    %175 = vmatprep.subr.bf16.mxu0 0
    %176 = vmatpush2.bf16.msra.mxu0 0
    %177 = vmatprep.subr.bf16.mxu0 0
    %178 = vmatpush2.bf16.msra.mxu0 0
    %179 = vmatprep.subr.bf16.mxu0 0
    %180 = vmatpush2.bf16.msra.mxu0 0
    %181 = vmatprep.subr.bf16.mxu0 0
    %182 = vmatpush2.bf16.msra.mxu0 0
    %183 = vmatprep.subr.bf16.mxu0 0
    %184 = vmatpush2.bf16.msra.mxu0 0
    %185 = vmatprep.subr.bf16.mxu0 0
    %186 = vmatpush2.bf16.msra.mxu0 0
    %187 = vmatprep.mubr.bf16.mxu0 0
    %188 = vmatmul.mubr.bf16.gmra.mxu0 %v153
    %v189 = vpop.f32.mrf.mxu0
    %v190 = vadd.f32 %v143, %v189
    %v191 = vpop.f32.mrf.mxu0
    %v192 = vpop.f32.mrf.mxu0
    %v193 = vpop.f32.mrf.mxu0
    %194 = vdwg.mxu0
    %195 = vst [vmem:[#allocation2] sm:$0xff] %v190
    // Predicated region
    $region22: #{tpu_custom_call.1} parent=1 // pred_check
      _
    $region23: #{tpu_custom_call.1} parent=1 // pred_check_branch
      %197 = sbr.rel (0) target = $region25
    $region24: #{tpu_custom_call.1} parent=1 // pred_region
      %s199 = ssub.s32 128, 128
      %200 = vsyncadd [#allocation3], %s199
      %s202 = sshll.u32 [#allocation2], 4
      %s203 = int_to_ptr.vmem [resolvable:$true] %s202
      %205 = dma.vmem_to_hbm [thread:$0]  %s203, 128, %s5, [#allocation3]
    $region25: #{tpu_custom_call.1} parent=1 // pred_fallthru
      _
    // Predicated region
    $region26: #{tpu_custom_call.1} parent=1 // pred_check
      _
    $region27: #{tpu_custom_call.1} parent=1 // pred_check_branch
      %207 = sbr.rel (0) target = $region29
    $region28: #{tpu_custom_call.1} parent=1 // pred_region
      %208 = dma.done [#allocation3], 128
    $region29: #{tpu_custom_call.1} parent=1 // pred_fallthru
      _
    %209 = vsyncpa [#allocation3], 1

</llo_original>
